<compile_context>
chip_gen: v7x
topology: tpu7x:2x2x1
jax: 0.10.0
libtpu: 0.0.40
codegen_flags: <defaults>
</compile_context>

<pallas_src>
import functools
import math

import jax
import jax.numpy as jnp
from jax.experimental import pallas as pl
from jax.experimental.pallas import tpu as pltpu

_GROWTH = 32               # dense-block growth rate (channels per DenseLayer)
_IN_EPS = 1e-5             # nn.InstanceNorm2d default eps
_VMEM_LIMIT = 32 * 1024 * 1024


def _round_up(x, m):
    return (x + m - 1) // m * m


# ---------------------------------------------------------------------------
# pltpu.roll sign probe: the im2col shifts depend on the roll direction, so we
# probe it once on device (outside jit) instead of trusting the convention.
# ---------------------------------------------------------------------------
_ROLL_LIKE_JNP = None


def _detect_roll_sign():
    global _ROLL_LIKE_JNP
    if _ROLL_LIKE_JNP is not None:
        return _ROLL_LIKE_JNP

    def probe(x_ref, o_ref):
        o_ref[...] = pltpu.roll(x_ref[...], 3, axis=1)

    x = jax.lax.broadcasted_iota(jnp.float32, (8, 128), 1)
    y = pl.pallas_call(probe, out_shape=jax.ShapeDtypeStruct((8, 128), jnp.float32))(x)
    _ROLL_LIKE_JNP = bool(jnp.allclose(y, jnp.roll(x, 3, axis=1)))
    return _ROLL_LIKE_JNP


def _roll_lanes(x, amount):
    """Lane rotation with jnp.roll semantics: result[:, l] = x[:, (l - amount) % Lp]."""
    lanes = x.shape[-1]
    amount = amount % lanes
    if amount == 0:
        return x
    if _ROLL_LIKE_JNP is False:    # flip if the hardware primitive rotates the other way
        amount = (lanes - amount) % lanes
    return pltpu.roll(x, amount, axis=1)


# ---------------------------------------------------------------------------
# In-kernel building blocks
# ---------------------------------------------------------------------------

def _conv_via_im2col(im_ref, xn, w, shifts):
    """KxK conv as ONE MXU matmul on an in-VMEM im2col.

    xn     : (C, Lp) bf16 activation on the zero-padded row-flattened grid.
    w      : (Cout, T*C) bf16 packed weight (columns tap-major, then channel).
    shifts : static flat lane shift per tap; tap block t, column l holds
             xn[:, l + shifts[t]].  Wrap only touches border/lane-pad columns.
    im_ref : bf16 VMEM scratch with at least T*C rows.
    """
    c = xn.shape[0]
    if len(shifts) == 1:
        cols = xn if shifts[0] == 0 else _roll_lanes(xn, -shifts[0])
        return jnp.dot(w, cols, preferred_element_type=jnp.float32)
    for t, s in enumerate(shifts):
        im_ref[t * c:(t + 1) * c, :] = _roll_lanes(xn, -s)
    return jnp.dot(w, im_ref[0:len(shifts) * c, :], preferred_element_type=jnp.float32)


def _in_relu(y, mask, inv_hw):
    """InstanceNorm2d(affine=False, eps=1e-5) + ReLU over the masked interior.

    Returns a bf16 MXU operand whose border / lane-pad columns are exactly 0.
    """
    ym = y.astype(jnp.float32) * mask
    mean = jnp.sum(ym, axis=-1, keepdims=True) * inv_hw
    yc = (ym - mean) * mask
    var = jnp.sum(yc * yc, axis=-1, keepdims=True) * inv_hw
    return jnp.maximum(yc * jax.lax.rsqrt(var + _IN_EPS), 0.0).astype(jnp.bfloat16)


# ---------------------------------------------------------------------------
# Fused DenseBlock(5 DenseLayers) + TransitionBlock (one pallas_call per stage)
# ---------------------------------------------------------------------------

def _dense_stage_kernel(x_ref, m_ref, *refs, cin0, nlayers, shifts, inv_hw):
    """One sample of a decoder stage, fully in VMEM.

    refs = (w0_0, w1_0, ..., w0_{n-1}, w1_{n-1}, w_trans, o_ref, xn_ref, im_ref).
    xn_ref caches IN+ReLU-normalized channels of the growing activation
    (per-channel IN stats do not change when channels are concatenated),
    so channel concats and re-normalization of old channels disappear.
    """
    ws = refs[:2 * nlayers]
    wt_ref = refs[2 * nlayers]
    o_ref = refs[2 * nlayers + 1]
    xn_ref = refs[2 * nlayers + 2]
    im_ref = refs[2 * nlayers + 3]

    mask = m_ref[...]
    xn_ref[0:cin0, :] = _in_relu(x_ref[0], mask, inv_hw)
    c = cin0
    for i in range(nlayers):
        # dense_layer0: IN+ReLU (cached) -> 3x3 conv -> 32 temporary channels
        y0 = _conv_via_im2col(im_ref, xn_ref[0:c, :], ws[2 * i][...], shifts)
        xn_ref[c:c + _GROWTH, :] = _in_relu(y0, mask, inv_hw)
        # dense_layer1 on cat([x, y0]): reuse cached rows [0:c], rows [c:c+32] = y0n
        y1 = _conv_via_im2col(im_ref, xn_ref[0:c + _GROWTH, :], ws[2 * i + 1][...], shifts)
        # running activation <- cat([x, y1]); overwrite the temporary y0 rows
        xn_ref[c:c + _GROWTH, :] = _in_relu(y1, mask, inv_hw)
        c += _GROWTH
    # TransitionBlock: IN+ReLU (cached) + 1x1 conv == plain matmul on the cache
    o_ref[0] = jnp.dot(wt_ref[...], xn_ref[0:c, :], preferred_element_type=jnp.float32)


def dense_stage(x, ws, wt):
    """DenseBlock(5) + TransitionBlock + nearest x2 upsample.  One pallas_call."""
    n, cin, h, w = x.shape
    assert cin % 16 == 0, cin               # keeps scratch row slices tile-aligned
    p = 1
    hp, wp = h + 2 * p, w + 2 * p
    flat = hp * wp
    lanes = _round_up(flat, 128)            # lane-dense, roll-friendly layout
    nlayers = len(ws) // 2
    ct, cfinal = wt.shape
    assert cfinal == cin + _GROWTH * nlayers

    shifts = tuple(di * wp + dj for di in (-1, 0, 1) for dj in (-1, 0, 1))
    xpad = jnp.pad(x, ((0, 0), (0, 0), (p, p), (p, p))).reshape(n, cin, flat)
    xpad = jnp.pad(xpad, ((0, 0), (0, 0), (0, lanes - flat)))
    mask = jnp.pad(jnp.ones((h, w), jnp.float32), ((p, p), (p, p))).reshape(1, flat)
    mask = jnp.pad(mask, ((0, 0), (0, lanes - flat)))

    kernel = functools.partial(_dense_stage_kernel, cin0=cin, nlayers=nlayers,
                               shifts=shifts, inv_hw=1.0 / float(h * w))
    in_specs = [pl.BlockSpec((1, cin, lanes), lambda i: (i, 0, 0)),
                pl.BlockSpec((1, lanes), lambda i: (0, 0))]
    in_specs += [pl.BlockSpec(wm.shape, lambda i: (0, 0)) for wm in ws]
    in_specs += [pl.BlockSpec(wt.shape, lambda i: (0, 0))]

    out = pl.pallas_call(
        kernel,
        out_shape=jax.ShapeDtypeStruct((n, ct, lanes), jnp.float32),
        grid=(n,),
        in_specs=in_specs,
        out_specs=pl.BlockSpec((1, ct, lanes), lambda i: (i, 0, 0)),
        scratch_shapes=[
            pltpu.VMEM((cfinal, lanes), jnp.bfloat16),                 # normalized cache
            pltpu.VMEM((len(shifts) * cfinal, lanes), jnp.bfloat16),   # im2col
        ],
        compiler_params=pltpu.CompilerParams(
            dimension_semantics=("parallel",),      # samples -> v7x's 2 TensorCores
            vmem_limit_bytes=_VMEM_LIMIT),
    )(xpad, mask, *ws, wt)

    out = out[:, :, :flat].reshape(n, ct, hp, wp)[:, :, p:p + h, p:p + w]
    return jnp.repeat(jnp.repeat(out, 2, axis=2), 2, axis=3)   # F.upsample_nearest x2


# ---------------------------------------------------------------------------
# Fused chain of plain convs (bias + activation): refine1 and refine2..5
# ---------------------------------------------------------------------------

def _conv_chain_kernel(x_ref, m_ref, *refs, layers):
    """Sequence of Conv2d(k, stride 1, 'same') + bias + activation on one padded grid.

    refs = (w_0, b_0, ..., w_{n-1}, b_{n-1}, o_ref, im_ref).  The border is
    re-zeroed between convs so each conv sees the zero padding the reference
    module would.
    """
    nl = len(layers)
    o_ref = refs[2 * nl]
    im_ref = refs[2 * nl + 1]
    mask = m_ref[...]
    cur = (x_ref[0] * mask).astype(jnp.bfloat16)
    for idx, (shifts, act) in enumerate(layers):
        y = _conv_via_im2col(im_ref, cur, refs[2 * idx][...], shifts) + refs[2 * idx + 1][...]
        if act == "relu":
            y = jnp.maximum(y, 0.0)
        elif act == "tanh":
            y = jnp.tanh(y)
        elif act == "sigmoid":
            y = jax.nn.sigmoid(y)
        if idx + 1 < nl:
            cur = (y * mask).astype(jnp.bfloat16)
        else:
            o_ref[0] = y


def conv_chain(x, ws, bs, acts, ksizes, cin_p):
    """Run a chain of refine convs fused in a single pallas_call."""
    n, cin, h, w = x.shape
    pmax = max((k - 1) // 2 for k in ksizes)
    hp, wp = h + 2 * pmax, w + 2 * pmax
    flat = hp * wp
    lanes = _round_up(flat, 128)

    xpad = jnp.pad(x, ((0, 0), (0, cin_p - cin), (pmax, pmax), (pmax, pmax)))
    xpad = xpad.reshape(n, cin_p, flat)
    xpad = jnp.pad(xpad, ((0, 0), (0, 0), (0, lanes - flat)))
    mask = jnp.pad(jnp.ones((h, w), jnp.float32),
                   ((pmax, pmax), (pmax, pmax))).reshape(1, flat)
    mask = jnp.pad(mask, ((0, 0), (0, lanes - flat)))

    layers = []
    im_rows = 0
    c_prev = cin_p
    for wmat, k, act in zip(ws, ksizes, acts):
        pk = (k - 1) // 2
        assert pk <= pmax                    # roll wraparound stays inside the border
        shifts = tuple(di * wp + dj for di in range(-pk, pk + 1)
                       for dj in range(-pk, pk + 1))
        assert wmat.shape[1] == len(shifts) * c_prev, (wmat.shape, k, c_prev)
        layers.append((shifts, act))
        im_rows = max(im_rows, len(shifts) * c_prev)
        c_prev = wmat.shape[0]
    layers = tuple(layers)
    cout_p = ws[-1].shape[0]

    operands = []
    in_specs = [pl.BlockSpec((1, cin_p, lanes), lambda i: (i, 0, 0)),
                pl.BlockSpec((1, lanes), lambda i: (0, 0))]
    for wmat, bias in zip(ws, bs):
        operands += [wmat, bias]
        in_specs += [pl.BlockSpec(wmat.shape, lambda i: (0, 0)),
                     pl.BlockSpec(bias.shape, lambda i: (0, 0))]

    out = pl.pallas_call(
        functools.partial(_conv_chain_kernel, layers=layers),
        out_shape=jax.ShapeDtypeStruct((n, cout_p, lanes), jnp.float32),
        grid=(n,),
        in_specs=in_specs,
        out_specs=pl.BlockSpec((1, cout_p, lanes), lambda i: (i, 0, 0)),
        scratch_shapes=[pltpu.VMEM((im_rows, lanes), jnp.bfloat16)],
        compiler_params=pltpu.CompilerParams(
            dimension_semantics=("parallel",),
            vmem_limit_bytes=_VMEM_LIMIT),
    )(xpad, mask, *operands)

    out = out[:, :, :flat].reshape(n, cout_p, hp, wp)
    return out[:, :, pmax:pmax + h, pmax:pmax + w]


# ---------------------------------------------------------------------------
# Tiny glue ops kept in plain JAX (pooling / resizing / pyramid 1x1 convs)
# ---------------------------------------------------------------------------

def avg_pool(x, k):
    n, c, h, w = x.shape
    return x.reshape(n, c, h // k, k, w // k, k).mean(axis=(3, 5))


def upsample_bilinear_align(x, size):
    """F.upsample(..., mode='bilinear', align_corners=True)."""
    n, c, h, w = x.shape
    hh, ww = size

    def coords(src, dst):
        if src == 1:
            z = jnp.zeros((dst,), jnp.int32)
            return z, z, jnp.zeros((dst,), jnp.float32)
        pos = jnp.arange(dst, dtype=jnp.float32) * ((src - 1) / (dst - 1))
        lo = jnp.clip(jnp.floor(pos).astype(jnp.int32), 0, src - 2)
        frac = pos - lo.astype(jnp.float32)
        return lo, lo + 1, frac

    y0, y1, fy = coords(h, hh)
    x0, x1, fx = coords(w, ww)
    top, bot = x[:, :, y0, :], x[:, :, y1, :]

    def interp_w(a):
        return a[:, :, :, x0] * (1.0 - fx) + a[:, :, :, x1] * fx

    ti, bi = interp_w(top), interp_w(bot)
    return ti * (1.0 - fy)[None, None, :, None] + bi * fy[None, None, :, None]


# ---------------------------------------------------------------------------
# Dense_decoder forward
# ---------------------------------------------------------------------------

def dense_decoder_forward(prep, x, x1, x2, x4, activation=None, out_channel=3):
    x42 = jnp.concatenate([x4, x2], axis=1)
    x5 = dense_stage(x42, prep["dec0_ws"], prep["dec0_wt"])
    x52 = jnp.concatenate([x5, x1], axis=1)
    x6 = dense_stage(x52, prep["dec1_ws"], prep["dec1_wt"])
    x7 = dense_stage(x6, prep["dec2_ws"], prep["dec2_wt"])
    x8 = dense_stage(x7, prep["dec3_ws"], prep["dec3_wt"])
    x8 = jnp.concatenate([x8, x], axis=1)

    # refine1: 3x3 conv + ReLU (channels zero-padded 19->32 / 20->32 in prep)
    x9 = conv_chain(x8, prep["refine1_ws"], prep["refine1_bs"],
                    acts=("relu",), ksizes=(3,), cin_p=32)[:, :20]
    hh, ww = x9.shape[2], x9.shape[3]

    # Pyramid pooling branch: 20->1 1x1 convs on <=8x8 maps + pool/bilinear glue
    # stay in XLA (pure launch overhead as Pallas, per perf review).
    branches = []
    for k, name in zip((32, 16, 8, 4), ("conv1010", "conv1020", "conv1030", "conv1040")):
        pooled = avg_pool(x9, k)
        wv = prep[name + "_w"].reshape(1, 20)
        bv = prep[name + "_b"]
        br = jax.nn.relu(jnp.einsum("oc,nchw->nohw", wv, pooled) + bv[None, :, None, None])
        branches.append(upsample_bilinear_align(br, (hh, ww)))

    dehaze = jnp.concatenate(branches + [x9], axis=1)
    last_act = "sigmoid" if activation == "sig" else "none"
    # refine2(tanh) -> refine3(relu) -> refine4(relu) -> refine5(last), fused
    dehaze = conv_chain(dehaze, prep["refine_ws"], prep["refine_bs"],
                        acts=("tanh", "relu", "relu", last_act),
                        ksizes=(3, 3, 7, 7), cin_p=32)
    return dehaze[:, :out_channel]


# ---------------------------------------------------------------------------
# Deterministic parameter initialization (module shapes) + one-time packing
# ---------------------------------------------------------------------------

def _conv_w(key, cout, cin, kh, kw):
    return jax.random.normal(key, (cout, cin, kh, kw), jnp.float32) / math.sqrt(cin * kh * kw)


def _conv_b(key, cout):
    return jax.random.normal(key, (cout,), jnp.float32) * 0.01


def init_params(key, out_channel=3):
    """Synthetic parameters with the exact shapes of Dense_decoder(out_channel, 0, 'IN')."""
    keys = iter(jax.random.split(key, 128))

    def dense_block(in_planes, re_rate=5):
        layers = []
        for i in range(re_rate):
            cin0 = in_planes + _GROWTH * i
            layers.append({
                "conv0_w": _conv_w(next(keys), 32, cin0, 3, 3),
                "conv1_w": _conv_w(next(keys), _GROWTH, cin0 + 32, 3, 3),
            })
        return layers

    p = {
        # trans_w stored conv-style (Cout, Cin, 1, 1); the module's 1x1
        # ConvTranspose2d at stride 1 is the same linear map (transposed layout).
        "dec0": {"dense": dense_block(128 + 384), "trans_w": _conv_w(next(keys), 32 + 128, 672, 1, 1)},
        "dec1": {"dense": dense_block(256 + 32), "trans_w": _conv_w(next(keys), 64, 448, 1, 1)},
        "dec2": {"dense": dense_block(64), "trans_w": _conv_w(next(keys), 32, 224, 1, 1)},
        "dec3": {"dense": dense_block(32), "trans_w": _conv_w(next(keys), 16, 192, 1, 1)},
        "refine1_w": _conv_w(next(keys), 20, 19, 3, 3), "refine1_b": _conv_b(next(keys), 20),
        "refine2_w": _conv_w(next(keys), 20, 24, 3, 3), "refine2_b": _conv_b(next(keys), 20),
        "refine3_w": _conv_w(next(keys), 20, 20, 3, 3), "refine3_b": _conv_b(next(keys), 20),
        "refine4_w": _conv_w(next(keys), 20, 20, 7, 7), "refine4_b": _conv_b(next(keys), 20),
        "refine5_w": _conv_w(next(keys), out_channel, 20, 7, 7), "refine5_b": _conv_b(next(keys), out_channel),
    }
    for name in ("conv1010", "conv1020", "conv1030", "conv1040"):
        p[name + "_w"] = _conv_w(next(keys), 1, 20, 1, 1)
        p[name + "_b"] = _conv_b(next(keys), 1)
    return p


def _pack_conv_w(w, cin_p=None, cout_p=None):
    """(Cout,Cin,KH,KW) -> (Cout_p, KH*KW*Cin_p) bf16, tap-major columns."""
    cout, cin, kh, kw = w.shape
    cin_p = cin_p or cin
    cout_p = cout_p or cout
    w = jnp.pad(w, ((0, cout_p - cout), (0, cin_p - cin), (0, 0), (0, 0)))
    return jnp.transpose(w, (0, 2, 3, 1)).reshape(cout_p, kh * kw * cin_p).astype(jnp.bfloat16)


def _pack_bias(b, cout_p):
    return jnp.pad(b, (0, cout_p - b.shape[0])).reshape(cout_p, 1).astype(jnp.float32)


def prepare_params(p):
    """One-time weight packing (transpose / zero-pad to 32 / bf16 cast) so the
    jitted forward has no per-call transposes or converts (perf feedback)."""
    _detect_roll_sign()
    prep = {}
    for name in ("dec0", "dec1", "dec2", "dec3"):
        ws = []
        for layer in p[name]["dense"]:
            ws.append(_pack_conv_w(layer["conv0_w"]))
            ws.append(_pack_conv_w(layer["conv1_w"]))
        prep[name + "_ws"] = ws
        prep[name + "_wt"] = p[name]["trans_w"][:, :, 0, 0].astype(jnp.bfloat16)
    prep["refine1_ws"] = [_pack_conv_w(p["refine1_w"], cin_p=32, cout_p=32)]
    prep["refine1_bs"] = [_pack_bias(p["refine1_b"], 32)]
    prep["refine_ws"] = [_pack_conv_w(p["refine2_w"], 32, 32),
                         _pack_conv_w(p["refine3_w"], 32, 32),
                         _pack_conv_w(p["refine4_w"], 32, 32),
                         _pack_conv_w(p["refine5_w"], 32, 32)]
    prep["refine_bs"] = [_pack_bias(p["refine2_b"], 32),
                         _pack_bias(p["refine3_b"], 32),
                         _pack_bias(p["refine4_b"], 32),
                         _pack_bias(p["refine5_b"], 32)]
    for name in ("conv1010", "conv1020", "conv1030", "conv1040"):
        prep[name + "_w"] = p[name + "_w"]
        prep[name + "_b"] = p[name + "_b"]
    return prep


# ---------------------------------------------------------------------------

if __name__ == "__main__":
    key = jax.random.PRNGKey(0)
    kp, kx, k1, k2, k4 = jax.random.split(key, 5)
    params = init_params(kp, out_channel=3)
    prep = prepare_params(params)

    # x at HxW, x1 at H/8, x2 & x4 at H/16 (as implied by the decoder's upsampling chain)
    x = jax.random.normal(kx, (2, 3, 32, 32), jnp.float32)
    x1 = jax.random.normal(k1, (2, 128, 4, 4), jnp.float32)
    x2 = jax.random.normal(k2, (2, 384, 2, 2), jnp.float32)
    x4 = jax.random.normal(k4, (2, 128, 2, 2), jnp.float32)

    fwd = jax.jit(functools.partial(dense_decoder_forward, activation=None, out_channel=3))
    out = jax.block_until_ready(fwd(prep, x, x1, x2, x4))

    assert out.shape == (2, 3, 32, 32), out.shape
    assert bool(jnp.all(jnp.isfinite(out)))
    print("KERNEL_OK")
</pallas_src>

<mosaic_0001>
module attributes {stable_mosaic.version = 11 : i64} {
  func.func @probe(%arg0: memref<8x128xf32, #tpu.memory_space<vmem>>, %arg1: memref<8x128xf32, #tpu.memory_space<vmem>>) attributes {dimension_semantics = [], scalar_prefetch = 0 : i64, scratch_operands = 0 : i64, tpu.core_type = #tpu.core_type<tc>} {
    %c0 = arith.constant 0 : index
    %c0_0 = arith.constant 0 : index
    %0 = vector.load %arg0[%c0, %c0_0] : memref<8x128xf32, #tpu.memory_space<vmem>>, vector<8x128xf32>
    %c3_i32 = arith.constant 3 : i32
    %1 = tpu.dynamic_rotate %0 by %c3_i32 dim 1 : vector<8x128xf32>, i32 -> vector<8x128xf32>
    %c0_1 = arith.constant 0 : index
    %c0_2 = arith.constant 0 : index
    %2 = vector.load %arg1[%c0_1, %c0_2] : memref<8x128xf32, #tpu.memory_space<vmem>>, vector<8x128xf32>
    tpu.vector_store %arg1[%c0_1, %c0_2], %1 {strides = array<i32>} : memref<8x128xf32, #tpu.memory_space<vmem>>, vector<8x128xf32>,
    return
  }
}

</mosaic_0001>

<llo_original>
// kernel: tpu_custom_call.1
$region0: #{tpu_custom_call.1}
  #allocation0 [shape = 'u32[]', space=smem, size = 0x4, offset = 0x4, fixed_abs, tag = 'smem constant byte address 0x4 - core index']
  #allocation1 [shape = 'u32[144,128]{1,0:T(1,128)}', space=vmem, size = 0x12000, scoped, tag = 'internal scratch']
  %s0 = inlined_call_operand.hbm [shape: f32[8,128], index: 0, kind: input, shape index: {}]
  %s1 = inlined_call_operand.hbm [shape: f32[8,128], index: 1, kind: output, shape index: {}]
  %s2 = sld [smem:[#allocation0]]
  $region18: #{tpu_custom_call.1} parent=0
    _
  %s4 = ssub.s32 1, %s2
  %s5 = scalar_select 0, %s4, %s2
  $region1: #{tpu_custom_call.1} parent=0
    #allocation2 [shape = 'u8[4096]{0}', space=vmem, size = 0x1000, scoped, tag = 'input window, operand 0, single buffered']
    #allocation3 [shape = 's32[1]{0}', space=sflag, size = 0x4, scoped, tag = 'scoped memory for tpu_custom_call.1']
    #allocation4 [shape = 's32[1]{0}', space=sflag, size = 0x4, scoped, tag = 'scoped memory for tpu_custom_call.1']
    #allocation5 [shape = 'u8[4096]{0}', space=vmem, size = 0x1000, scoped, tag = 'output window, operand 0, single buffered']
    %6 = vsyncpa [#allocation3], 0
    %7 = vsyncpa [#allocation4], 0
    // Predicated region
    $region2: #{tpu_custom_call.1} parent=1 // pred_check
      _
    $region3: #{tpu_custom_call.1} parent=1 // pred_check_branch
      %9 = sbr.rel (0) target = $region5
    $region4: #{tpu_custom_call.1} parent=1 // pred_region
      %s11 = ssub.s32 128, 128
      %12 = vsyncadd [#allocation3], %s11
      %s14 = sshll.u32 [#allocation2], 4
      %s15 = int_to_ptr.vmem [resolvable:$true] %s14
      %17 = dma.hbm_to_vmem [thread:$0]  %s0, 128, %s15, [#allocation3]
    $region5: #{tpu_custom_call.1} parent=1 // pred_fallthru
      _
    // Predicated region
    $region6: #{tpu_custom_call.1} parent=1 // pred_check
      _
    $region7: #{tpu_custom_call.1} parent=1 // pred_check_branch
      %19 = sbr.rel (0) target = $region9
    $region8: #{tpu_custom_call.1} parent=1 // pred_region
      %20 = dma.done [#allocation3], 128
    $region9: #{tpu_custom_call.1} parent=1 // pred_fallthru
      _
    %v21 = vld [vmem:[#allocation2] sm:$0xff]
    %22 = vrot.lane.b32.xlu0 %v21, 3
    %v23 = vpop.permute.xlu0 %22
    %24 = vst [vmem:[#allocation5] sm:$0xff] %v23
    // Predicated region
    $region10: #{tpu_custom_call.1} parent=1 // pred_check
      _
    $region11: #{tpu_custom_call.1} parent=1 // pred_check_branch
      %26 = sbr.rel (0) target = $region13
    $region12: #{tpu_custom_call.1} parent=1 // pred_region
      %s28 = ssub.s32 128, 128
      %29 = vsyncadd [#allocation4], %s28
      %s31 = sshll.u32 [#allocation5], 4
      %s32 = int_to_ptr.vmem [resolvable:$true] %s31
      %34 = dma.vmem_to_hbm [thread:$0]  %s32, 128, %s1, [#allocation4]
    $region13: #{tpu_custom_call.1} parent=1 // pred_fallthru
      _
    // Predicated region
    $region14: #{tpu_custom_call.1} parent=1 // pred_check
      _
    $region15: #{tpu_custom_call.1} parent=1 // pred_check_branch
      %36 = sbr.rel (0) target = $region17
    $region16: #{tpu_custom_call.1} parent=1 // pred_region
      %37 = dma.done [#allocation4], 128
    $region17: #{tpu_custom_call.1} parent=1 // pred_fallthru
      _
    %38 = vsyncpa [#allocation3], 1
    %39 = vsyncpa [#allocation4], 1

</llo_original>
